<compile_context>
chip_gen: v5e
topology: v5e:2x2
jax: 0.10.0
libtpu: 0.0.40
codegen_flags: <defaults>
</compile_context>

<pallas_src>
import functools

import jax
import jax.numpy as jnp
import numpy as np
from jax.experimental import pallas as pl
from jax.experimental.pallas import tpu as pltpu

_LANE = 128
_SUBLANE = 8


def _round_up(n, m):
    return ((n + m - 1) // m) * m


@functools.lru_cache(maxsize=1)
def _vmem_capacity_bytes():
    """Per-core VMEM capacity (128 MiB on v5e/v6e, 64 MiB on v7x)."""
    try:
        return int(pltpu.get_tpu_info().vmem_capacity_bytes)
    except Exception:
        return 64 * 1024 * 1024  # conservative fallback (v7x per-TensorCore)


# ---------------------------------------------------------------------------
# Fused Pallas kernel: whole network in one body
# ---------------------------------------------------------------------------
def _make_fused_kernel(num_hidden):
    def kernel(*refs):
        # refs = (x, w0, b0, w1, b1, ..., w_{L-1}, b_{L-1}, w_out, out)
        x_ref = refs[0]
        o_ref = refs[-1]
        h = x_ref[...]                                          # (TM, Din)      f32
        for i in range(num_hidden):
            w = refs[1 + 2 * i][...]                            # (Kin, Kout_pad) bf16
            b = refs[2 + 2 * i][...]                            # (1,   Kout_pad) f32
            acc = jnp.dot(h.astype(jnp.bfloat16), w,
                          preferred_element_type=jnp.float32)   # MXU bf16 x bf16 -> f32
            h = jnp.maximum(acc + b, 0.0)                       # bias + ReLU in f32 (BN folded)
        w_out = refs[1 + 2 * num_hidden][...]                   # (Kh, Dout_pad) bf16
        y = jnp.dot(h.astype(jnp.bfloat16), w_out,
                    preferred_element_type=jnp.float32)
        o_ref[...] = jnp.maximum(y, 0.0)                        # final ReLU, no bias

    return kernel


@functools.partial(jax.jit, static_argnums=(4,))
def _forward_impl(x, ws, bs, w_out, out_channel):
    B, Din = x.shape
    Dout_pad = w_out.shape[1]
    num_hidden = len(ws)

    x32 = x.astype(jnp.float32)

    # ---- generation-aware VMEM budget & batch tile size --------------------
    vmem_limit = min(int(_vmem_capacity_bytes() * 0.85), 112 * 1024 * 1024)

    weight_bytes = sum(int(np.prod(w.shape)) * w.dtype.itemsize for w in ws)
    weight_bytes += sum(int(np.prod(b.shape)) * b.dtype.itemsize for b in bs)
    weight_bytes += int(np.prod(w_out.shape)) * w_out.dtype.itemsize
    # TODO(synk): when 2*weight_bytes approaches vmem_limit, switch to weight streaming.

    max_feat = max([Din, Dout_pad] + [int(w.shape[1]) for w in ws])
    # Per batch-row VMEM bytes: double-buffered in/out tiles + live f32+bf16 activations.
    per_row = 4 * Din * 2 + 4 * Dout_pad * 2 + (4 + 2) * max_feat * 2
    budget_rows = (vmem_limit - 2 * weight_bytes - (4 << 20)) // max(per_row, 1)
    tm_cap = max(_SUBLANE, min(1024, (budget_rows // _SUBLANE) * _SUBLANE))

    # Split the batch so the "parallel" grid axis has >= 2 steps when possible
    # (keeps both of v7x's TensorCores busy) while keeping pad waste < one sublane tile.
    n_tiles = pl.cdiv(B, tm_cap)
    if B >= 2 * _SUBLANE:
        n_tiles = max(n_tiles, 2)
    TM = _round_up(pl.cdiv(B, n_tiles), _SUBLANE)
    grid = (pl.cdiv(B, TM),)   # ragged last block: Pallas masks OOB output stores

    # ---- specs: x/out tiled over batch, weights resident (grid-invariant) --
    in_specs = [pl.BlockSpec((TM, Din), lambda i: (i, 0))]
    flat_weights = []
    for w, b in zip(ws, bs):
        in_specs.append(pl.BlockSpec(w.shape, lambda i: (0, 0)))   # weights resident
        in_specs.append(pl.BlockSpec(b.shape, lambda i: (0, 0)))
        flat_weights.extend((w, b))
    in_specs.append(pl.BlockSpec(w_out.shape, lambda i: (0, 0)))
    flat_weights.append(w_out)

    out = pl.pallas_call(
        _make_fused_kernel(num_hidden),
        out_shape=jax.ShapeDtypeStruct((B, Dout_pad), jnp.float32),
        grid=grid,
        in_specs=in_specs,
        out_specs=pl.BlockSpec((TM, Dout_pad), lambda i: (i, 0)),
        compiler_params=pltpu.CompilerParams(
            dimension_semantics=("parallel",),
            vmem_limit_bytes=vmem_limit,
        ),
    )(x32, *flat_weights)

    return out[:, :out_channel]


def dense_ann_forward(x, packed_params):
    return _forward_impl(
        x,
        tuple(packed_params["w"]),
        tuple(packed_params["b"]),
        packed_params["w_out"],
        packed_params["out_channel"],
    )


# ---------------------------------------------------------------------------
# Parameter construction (mirrors DenseANN.__init__ / init_emb, eval mode)
# ---------------------------------------------------------------------------
def xavier_uniform(key, fan_out, fan_in):
    # torch.nn.init.xavier_uniform_ on a (out, in) Linear weight
    bound = float(np.sqrt(6.0 / (fan_in + fan_out)))
    return jax.random.uniform(key, (fan_out, fan_in), jnp.float32, -bound, bound)


def make_raw_params(key, in_channel, hidden_layers, out_channel, eps=1e-5):
    """Unfolded parameters in torch layout (weights are (out, in))."""
    dims = [in_channel] + list(hidden_layers)
    keys = jax.random.split(key, len(hidden_layers) + 1)
    raw = {"hidden": [], "w_out": None, "eps": eps}
    for i in range(len(hidden_layers)):
        din, dout = dims[i], dims[i + 1]
        raw["hidden"].append(
            dict(
                w=xavier_uniform(keys[i], dout, din),
                b=jnp.zeros((dout,), jnp.float32),              # bias filled with 0.0
                gamma=jnp.ones((dout,), jnp.float32),           # BN defaults
                beta=jnp.zeros((dout,), jnp.float32),
                running_mean=jnp.zeros((dout,), jnp.float32),
                running_var=jnp.ones((dout,), jnp.float32),
            )
        )
    raw["w_out"] = xavier_uniform(keys[-1], out_channel, hidden_layers[-1])
    return raw


def fold_and_pad_params(raw, in_channel, out_channel, weight_dtype=jnp.bfloat16):
    """Fold BN+bias into weights; pad only OUTPUT feature dims to 128; cast weights bf16."""
    eps = raw["eps"]
    ws, bs = [], []
    din = in_channel            # first layer keeps the true K (no input-feature padding)
    for layer in raw["hidden"]:
        dout = layer["w"].shape[0]
        dout_pad = _round_up(dout, _LANE)
        scale = layer["gamma"] / jnp.sqrt(layer["running_var"] + eps)
        shift = layer["beta"] - layer["running_mean"] * scale
        w_fused = layer["w"].T * scale[None, :]                 # (din_true, dout) f32
        b_fused = layer["b"] * scale + shift                    # (dout,)
        w_p = jnp.zeros((din, dout_pad), jnp.float32)
        w_p = w_p.at[: w_fused.shape[0], :dout].set(w_fused)
        b_p = jnp.zeros((1, dout_pad), jnp.float32).at[0, :dout].set(b_fused)
        ws.append(w_p.astype(weight_dtype))                     # bf16 weights
        bs.append(b_p)                                          # bias stays f32
        din = dout_pad
    w_out_t = raw["w_out"].T                                    # (hidden_last, out)
    out_pad = _round_up(out_channel, _LANE)
    w_out_p = jnp.zeros((din, out_pad), jnp.float32)
    w_out_p = w_out_p.at[: w_out_t.shape[0], :out_channel].set(w_out_t)
    return {"w": ws, "b": bs, "w_out": w_out_p.astype(weight_dtype),
            "out_channel": out_channel}


# ---------------------------------------------------------------------------
# References for sanity checks
# ---------------------------------------------------------------------------
def dense_ann_reference(x, raw):
    """Plain-JAX f32 reference with the original (un-folded) eval-mode math."""
    eps = raw["eps"]
    h = x.astype(jnp.float32)
    for layer in raw["hidden"]:
        h = h @ layer["w"].T + layer["b"]                       # Linear
        h = (h - layer["running_mean"]) / jnp.sqrt(layer["running_var"] + eps)
        h = h * layer["gamma"] + layer["beta"]                  # BatchNorm1d (eval)
        h = jnp.maximum(h, 0.0)                                 # ReLU (dropout = identity)
    y = h @ raw["w_out"].T                                      # Linear, no bias
    return jnp.maximum(y, 0.0)


def dense_ann_reference_folded(x, packed):
    """Plain-JAX emulation of the exact folded bf16/f32 math the kernel executes."""
    h = x.astype(jnp.float32)
    for w, b in zip(packed["w"], packed["b"]):
        acc = jnp.dot(h.astype(jnp.bfloat16), w, preferred_element_type=jnp.float32)
        h = jnp.maximum(acc + b, 0.0)
    y = jnp.dot(h.astype(jnp.bfloat16), packed["w_out"],
                preferred_element_type=jnp.float32)
    return jnp.maximum(y, 0.0)[:, : packed["out_channel"]]


if __name__ == "__main__":
    key = jax.random.PRNGKey(0)
    k_param, k_x = jax.random.split(key)

    in_channel = 32
    hidden_layers = [64, 32]
    out_channel = 16
    batch = 8

    raw = make_raw_params(k_param, in_channel, hidden_layers, out_channel)
    packed = fold_and_pad_params(raw, in_channel, out_channel)
    x = jax.random.normal(k_x, (batch, in_channel), jnp.float32)

    y = dense_ann_forward(x, packed)
    y = jax.block_until_ready(y)

    # Tight check: kernel vs a JAX emulation of the identical folded bf16/f32 math.
    y_folded = dense_ann_reference_folded(x, packed)
    np.testing.assert_allclose(np.asarray(y), np.asarray(y_folded), rtol=1e-5, atol=1e-5)

    # Loose check: kernel vs the original un-folded f32 math (bf16 weights/activations).
    y_ref = dense_ann_reference(x, raw)
    np.testing.assert_allclose(np.asarray(y), np.asarray(y_ref), rtol=5e-2, atol=5e-2)

    print("KERNEL_OK")
</pallas_src>

<mosaic_0001>
module attributes {stable_mosaic.version = 11 : i64} {
  func.func @kernel(%arg0: i32, %arg1: memref<8x32xf32, #tpu.memory_space<vmem>>, %arg2: memref<32x128xbf16, #tpu.memory_space<vmem>>, %arg3: memref<1x128xf32, #tpu.memory_space<vmem>>, %arg4: memref<128x128xbf16, #tpu.memory_space<vmem>>, %arg5: memref<1x128xf32, #tpu.memory_space<vmem>>, %arg6: memref<128x128xbf16, #tpu.memory_space<vmem>>, %arg7: memref<8x128xf32, #tpu.memory_space<vmem>>) attributes {dimension_semantics = [#tpu.dimension_semantics<parallel>], iteration_bounds = array<i64: 1>, scalar_prefetch = 0 : i64, scratch_operands = 0 : i64, tpu.core_type = #tpu.core_type<tc>, window_params = [{transform_indices = @transform_0, window_bounds = array<i64: 8, 32>}, {pipeline_mode = #tpu.pipeline_mode<synchronous>, transform_indices = @transform_1, window_bounds = array<i64: 32, 128>}, {pipeline_mode = #tpu.pipeline_mode<synchronous>, transform_indices = @transform_2, window_bounds = array<i64: 1, 128>}, {pipeline_mode = #tpu.pipeline_mode<synchronous>, transform_indices = @transform_3, window_bounds = array<i64: 128, 128>}, {pipeline_mode = #tpu.pipeline_mode<synchronous>, transform_indices = @transform_4, window_bounds = array<i64: 1, 128>}, {pipeline_mode = #tpu.pipeline_mode<synchronous>, transform_indices = @transform_5, window_bounds = array<i64: 128, 128>}, {transform_indices = @transform_6, window_bounds = array<i64: 8, 128>}]} {
    %c0 = arith.constant 0 : index
    %c0_0 = arith.constant 0 : index
    %0 = vector.load %arg1[%c0, %c0_0] : memref<8x32xf32, #tpu.memory_space<vmem>>, vector<8x32xf32>
    %c0_1 = arith.constant 0 : index
    %c0_2 = arith.constant 0 : index
    %1 = vector.load %arg2[%c0_1, %c0_2] : memref<32x128xbf16, #tpu.memory_space<vmem>>, vector<32x128xbf16>
    %c0_3 = arith.constant 0 : index
    %c0_4 = arith.constant 0 : index
    %2 = vector.load %arg3[%c0_3, %c0_4] : memref<1x128xf32, #tpu.memory_space<vmem>>, vector<1x128xf32>
    %3 = arith.truncf %0 : vector<8x32xf32> to vector<8x32xbf16>
    %cst = arith.constant dense<0.000000e+00> : vector<8x128xf32>
    %4 = tpu.matmul %3, %1, %cst {dimension_numbers = #tpu.dot_dimension_numbers<[1], [0], [0], [1], [0, 0, 1, 1], [], []>} : vector<8x32xbf16>, vector<32x128xbf16>, vector<8x128xf32> -> vector<8x128xf32>
    %5 = vector.broadcast %2 : vector<1x128xf32> to vector<8x128xf32>
    %6 = arith.addf %4, %5 : vector<8x128xf32>
    %cst_5 = arith.constant 0.000000e+00 : f32
    %7 = vector.broadcast %cst_5 : f32 to vector<8x128xf32>
    %8 = arith.maximumf %6, %7 : vector<8x128xf32>
    %c0_6 = arith.constant 0 : index
    %c0_7 = arith.constant 0 : index
    %9 = vector.load %arg4[%c0_6, %c0_7] : memref<128x128xbf16, #tpu.memory_space<vmem>>, vector<128x128xbf16>
    %c0_8 = arith.constant 0 : index
    %c0_9 = arith.constant 0 : index
    %10 = vector.load %arg5[%c0_8, %c0_9] : memref<1x128xf32, #tpu.memory_space<vmem>>, vector<1x128xf32>
    %11 = arith.truncf %8 : vector<8x128xf32> to vector<8x128xbf16>
    %cst_10 = arith.constant dense<0.000000e+00> : vector<8x128xf32>
    %12 = tpu.matmul %11, %9, %cst_10 {dimension_numbers = #tpu.dot_dimension_numbers<[1], [0], [0], [1], [0, 0, 1, 1], [], []>} : vector<8x128xbf16>, vector<128x128xbf16>, vector<8x128xf32> -> vector<8x128xf32>
    %13 = vector.broadcast %10 : vector<1x128xf32> to vector<8x128xf32>
    %14 = arith.addf %12, %13 : vector<8x128xf32>
    %cst_11 = arith.constant 0.000000e+00 : f32
    %15 = vector.broadcast %cst_11 : f32 to vector<8x128xf32>
    %16 = arith.maximumf %14, %15 : vector<8x128xf32>
    %c0_12 = arith.constant 0 : index
    %c0_13 = arith.constant 0 : index
    %17 = vector.load %arg6[%c0_12, %c0_13] : memref<128x128xbf16, #tpu.memory_space<vmem>>, vector<128x128xbf16>
    %18 = arith.truncf %16 : vector<8x128xf32> to vector<8x128xbf16>
    %cst_14 = arith.constant dense<0.000000e+00> : vector<8x128xf32>
    %19 = tpu.matmul %18, %17, %cst_14 {dimension_numbers = #tpu.dot_dimension_numbers<[1], [0], [0], [1], [0, 0, 1, 1], [], []>} : vector<8x128xbf16>, vector<128x128xbf16>, vector<8x128xf32> -> vector<8x128xf32>
    %cst_15 = arith.constant 0.000000e+00 : f32
    %20 = vector.broadcast %cst_15 : f32 to vector<8x128xf32>
    %21 = arith.maximumf %19, %20 : vector<8x128xf32>
    %c0_16 = arith.constant 0 : index
    %c0_17 = arith.constant 0 : index
    %22 = vector.load %arg7[%c0_16, %c0_17] : memref<8x128xf32, #tpu.memory_space<vmem>>, vector<8x128xf32>
    tpu.vector_store %arg7[%c0_16, %c0_17], %21 {strides = array<i32>} : memref<8x128xf32, #tpu.memory_space<vmem>>, vector<8x128xf32>,
    return
  }
  func.func @transform_0(%arg0: i32) -> (i32, i32) {
    %c0_i32 = arith.constant 0 : i32
    %c0_i32_0 = arith.constant 0 : i32
    return %arg0, %c0_i32 : i32, i32
  }
  func.func @transform_1(%arg0: i32) -> (i32, i32) {
    %c0_i32 = arith.constant 0 : i32
    %c0_i32_0 = arith.constant 0 : i32
    %c0_i32_1 = arith.constant 0 : i32
    return %c0_i32, %c0_i32_0 : i32, i32
  }
  func.func @transform_2(%arg0: i32) -> (i32, i32) {
    %c0_i32 = arith.constant 0 : i32
    %c0_i32_0 = arith.constant 0 : i32
    %c0_i32_1 = arith.constant 0 : i32
    return %c0_i32, %c0_i32_0 : i32, i32
  }
  func.func @transform_3(%arg0: i32) -> (i32, i32) {
    %c0_i32 = arith.constant 0 : i32
    %c0_i32_0 = arith.constant 0 : i32
    %c0_i32_1 = arith.constant 0 : i32
    return %c0_i32, %c0_i32_0 : i32, i32
  }
  func.func @transform_4(%arg0: i32) -> (i32, i32) {
    %c0_i32 = arith.constant 0 : i32
    %c0_i32_0 = arith.constant 0 : i32
    %c0_i32_1 = arith.constant 0 : i32
    return %c0_i32, %c0_i32_0 : i32, i32
  }
  func.func @transform_5(%arg0: i32) -> (i32, i32) {
    %c0_i32 = arith.constant 0 : i32
    %c0_i32_0 = arith.constant 0 : i32
    %c0_i32_1 = arith.constant 0 : i32
    return %c0_i32, %c0_i32_0 : i32, i32
  }
  func.func @transform_6(%arg0: i32) -> (i32, i32) {
    %c0_i32 = arith.constant 0 : i32
    %c0_i32_0 = arith.constant 0 : i32
    return %arg0, %c0_i32 : i32, i32
  }
}

</mosaic_0001>

<llo_original>
// kernel: _forward_impl.1
$region0: #{_forward_impl.1}
  #allocation0 [shape = 'u32[]', space=smem, size = 0x4, offset = 0x4, fixed_abs, tag = 'smem constant byte address 0x4 - core index']
  #allocation1 [shape = 'u32[72,128]{1,0:T(1,128)}', space=vmem, size = 0x9000, scoped, tag = 'internal scratch']
  %s0 = inlined_call_operand.hbm [shape: f32[8,32], index: 0, kind: input, shape index: {}]
  %s1 = inlined_call_operand.hbm [shape: bf16[32,128], index: 1, kind: input, shape index: {}]
  %s2 = inlined_call_operand.vmem [shape: f32[1,128], index: 2, kind: input, shape index: {}]
  %s3 = inlined_call_operand.hbm [shape: bf16[128,128], index: 3, kind: input, shape index: {}]
  %s4 = inlined_call_operand.vmem [shape: f32[1,128], index: 4, kind: input, shape index: {}]
  %s5 = inlined_call_operand.hbm [shape: bf16[128,128], index: 5, kind: input, shape index: {}]
  %s6 = inlined_call_operand.hbm [shape: f32[8,128], index: 6, kind: output, shape index: {}]
  %s7 = sld [smem:[#allocation0]]
  $region50: #{_forward_impl.1} parent=0
    _
  %s9 = ssub.s32 1, %s7
  %s10 = scalar_select 0, %s9, %s7
  $region1: #{_forward_impl.1} parent=0
    #allocation2 [shape = 'u8[4096]{0}', space=vmem, size = 0x1000, scoped, tag = 'input window, operand 0, single buffered']
    #allocation3 [shape = 's32[1]{0}', space=sflag, size = 0x4, scoped, tag = 'scoped memory for _forward_impl.1']
    #allocation4 [shape = 's32[1]{0}', space=sflag, size = 0x4, scoped, tag = 'scoped memory for _forward_impl.1']
    #allocation5 [shape = 'u8[8192]{0}', space=vmem, size = 0x2000, scoped, tag = 'input window, operand 1, single buffered']
    #allocation6 [shape = 's32[1]{0}', space=sflag, size = 0x4, scoped, tag = 'scoped memory for _forward_impl.1']
    #allocation7 [shape = 'u8[32768]{0}', space=vmem, size = 0x8000, scoped, tag = 'input window, operand 3, single buffered']
    #allocation8 [shape = 'u8[32768]{0}', space=vmem, size = 0x8000, scoped, tag = 'input window, operand 5, single buffered']
    #allocation9 [shape = 's32[1]{0}', space=sflag, size = 0x4, scoped, tag = 'scoped memory for _forward_impl.1']
    #allocation10 [shape = 'u8[4096]{0}', space=vmem, size = 0x1000, scoped, tag = 'output window, operand 0, single buffered']
    %11 = vsyncpa [#allocation3], 0
    %12 = vsyncpa [#allocation6], 0
    %13 = vsyncpa [#allocation9], 0
    %14 = vsyncpa [#allocation4], 0
    // Predicated region
    $region2: #{_forward_impl.1} parent=1 // pred_check
      _
    $region3: #{_forward_impl.1} parent=1 // pred_check_branch
      %16 = sbr.rel (0) target = $region5
    $region4: #{_forward_impl.1} parent=1 // pred_region
      %18 = vsyncadd [#allocation3], 0
      %s20 = sshll.u32 %s0, 4
      %s21 = int_to_ptr.hbm [resolvable:$true] %s20
      %s22 = sshll.u32 [#allocation2], 4
      %s23 = int_to_ptr.vmem [resolvable:$true] %s22
      %25 = dma.hbm_to_vmem [thread:$0]  %s21, 128, %s23, [#allocation3]
    $region5: #{_forward_impl.1} parent=1 // pred_fallthru
      _
    // Predicated region
    $region6: #{_forward_impl.1} parent=1 // pred_check
      _
    $region7: #{_forward_impl.1} parent=1 // pred_check_branch
      %27 = sbr.rel (0) target = $region9
    $region8: #{_forward_impl.1} parent=1 // pred_region
      %29 = vsyncadd [#allocation6], 0
      %s30 = sshll.u32 %s1, 4
      %s31 = int_to_ptr.hbm [resolvable:$true] %s30
      %s32 = sshll.u32 [#allocation5], 4
      %s33 = int_to_ptr.vmem [resolvable:$true] %s32
      %38 = dma.hbm_to_vmem [thread:$0]  %s31, 256, %s33, [#allocation6], 64, 64, 4
    $region9: #{_forward_impl.1} parent=1 // pred_fallthru
      _
    // Predicated region
    $region10: #{_forward_impl.1} parent=1 // pred_check
      _
    $region11: #{_forward_impl.1} parent=1 // pred_check_branch
      %40 = sbr.rel (0) target = $region13
    $region12: #{_forward_impl.1} parent=1 // pred_region
      _
    $region13: #{_forward_impl.1} parent=1 // pred_fallthru
      _
    // Predicated region
    $region14: #{_forward_impl.1} parent=1 // pred_check
      _
    $region15: #{_forward_impl.1} parent=1 // pred_check_branch
      %42 = sbr.rel (0) target = $region17
    $region16: #{_forward_impl.1} parent=1 // pred_region
      %44 = vsyncadd [#allocation6], 0
      %s45 = sshll.u32 %s3, 4
      %s46 = int_to_ptr.hbm [resolvable:$true] %s45
      %s47 = sshll.u32 [#allocation7], 4
      %s48 = int_to_ptr.vmem [resolvable:$true] %s47
      %53 = dma.hbm_to_vmem [thread:$0]  %s46, 1024, %s48, [#allocation6], 64, 64, 4
    $region17: #{_forward_impl.1} parent=1 // pred_fallthru
      _
    // Predicated region
    $region18: #{_forward_impl.1} parent=1 // pred_check
      _
    $region19: #{_forward_impl.1} parent=1 // pred_check_branch
      %55 = sbr.rel (0) target = $region21
    $region20: #{_forward_impl.1} parent=1 // pred_region
      _
    $region21: #{_forward_impl.1} parent=1 // pred_fallthru
      _
    // Predicated region
    $region22: #{_forward_impl.1} parent=1 // pred_check
      _
    $region23: #{_forward_impl.1} parent=1 // pred_check_branch
      %57 = sbr.rel (0) target = $region25
    $region24: #{_forward_impl.1} parent=1 // pred_region
      %59 = vsyncadd [#allocation9], 0
      %s60 = sshll.u32 %s5, 4
      %s61 = int_to_ptr.hbm [resolvable:$true] %s60
      %s62 = sshll.u32 [#allocation8], 4
      %s63 = int_to_ptr.vmem [resolvable:$true] %s62
      %68 = dma.hbm_to_vmem [thread:$0]  %s61, 1024, %s63, [#allocation9], 64, 64, 4
    $region25: #{_forward_impl.1} parent=1 // pred_fallthru
      _
    // Predicated region
    $region26: #{_forward_impl.1} parent=1 // pred_check
      _
    $region27: #{_forward_impl.1} parent=1 // pred_check_branch
      %70 = sbr.rel (0) target = $region29
    $region28: #{_forward_impl.1} parent=1 // pred_region
      %72 = dma.done [#allocation3], 128
    $region29: #{_forward_impl.1} parent=1 // pred_fallthru
      _
    // Predicated region
    $region30: #{_forward_impl.1} parent=1 // pred_check
      _
    $region31: #{_forward_impl.1} parent=1 // pred_check_branch
      %74 = sbr.rel (0) target = $region33
    $region32: #{_forward_impl.1} parent=1 // pred_region
      %76 = dma.done [#allocation6], 256
    $region33: #{_forward_impl.1} parent=1 // pred_fallthru
      _
    // Predicated region
    $region34: #{_forward_impl.1} parent=1 // pred_check
      _
    $region35: #{_forward_impl.1} parent=1 // pred_check_branch
      %78 = sbr.rel (0) target = $region37
    $region36: #{_forward_impl.1} parent=1 // pred_region
      %80 = dma.done [#allocation6], 1024
    $region37: #{_forward_impl.1} parent=1 // pred_fallthru
      _
    // Predicated region
    $region38: #{_forward_impl.1} parent=1 // pred_check
      _
    $region39: #{_forward_impl.1} parent=1 // pred_check_branch
      %82 = sbr.rel (0) target = $region41
    $region40: #{_forward_impl.1} parent=1 // pred_region
      %84 = dma.done [#allocation9], 1024
    $region41: #{_forward_impl.1} parent=1 // pred_fallthru
      _
    %v86 = vld [vmem:[#allocation2] sm:$0xff]
    %v87 = vld [vmem:[#allocation5] sm:$0xf]
    %v88 = vld [vmem:[#allocation5 + $0x4] sm:$0xf]
    %v89 = vld [vmem:[#allocation5 + $0x8] sm:$0xf]
    %v90 = vld [vmem:[#allocation5 + $0xc] sm:$0xf]
    %v91 = vld [vmem:[%s2] sm:$0x1]
    %v92 = vpack.c.bf16 %v86, %v86
    %v94 = vperm.slane %v91, 0
    %v100 = vunpack.c.l.b16 %v87
    %v101 = vunpack.c.l.b16 %v88
    %v102 = vunpack.c.l.b16 %v89
    %v103 = vunpack.c.l.b16 %v90
    %v104 = vpack.c.b16 %v101, %v100
    %v105 = vpack.c.b16 %v103, %v102
    %vm108 = vcmask 261120
    %v110 = vsel %vm108, %v92, 0
    %112 = vmatpush.bf16.msra.mxu0 0
    %113 = vmatpush.bf16.msra.mxu0 0
    %114 = vmatpush.bf16.msra.mxu0 0
    %115 = vmatpush.bf16.msra.mxu0 0
    %116 = vmatpush.bf16.msra.mxu0 0
    %117 = vmatpush.bf16.msra.mxu0 0
    %118 = vmatpush.bf16.msra.mxu0 %v105
    %119 = vmatpush.bf16.msra.mxu0 %v104
    %120 = vmatmul.bf16.gmra.mxu0 %v110
    %v121 = vpop.f32.mrf.mxu0
    %v122 = vadd.f32 %v94, %v121
    %v123 = vpop.f32.mrf.mxu0
    %124 = vdwg.mxu0
    %v125 = vmax.f32 %v122, 0.0
    %v126 = vld [vmem:[#allocation7] sm:$0xf]
    %v127 = vld [vmem:[#allocation7 + $0x4] sm:$0xf]
    %v128 = vld [vmem:[#allocation7 + $0x8] sm:$0xf]
    %v129 = vld [vmem:[#allocation7 + $0xc] sm:$0xf]
    %v130 = vld [vmem:[#allocation7 + $0x10] sm:$0xf]
    %v131 = vld [vmem:[#allocation7 + $0x14] sm:$0xf]
    %v132 = vld [vmem:[#allocation7 + $0x18] sm:$0xf]
    %v133 = vld [vmem:[#allocation7 + $0x1c] sm:$0xf]
    %v134 = vld [vmem:[#allocation7 + $0x20] sm:$0xf]
    %v135 = vld [vmem:[#allocation7 + $0x24] sm:$0xf]
    %v136 = vld [vmem:[#allocation7 + $0x28] sm:$0xf]
    %v137 = vld [vmem:[#allocation7 + $0x2c] sm:$0xf]
    %v138 = vld [vmem:[#allocation7 + $0x30] sm:$0xf]
    %v139 = vld [vmem:[#allocation7 + $0x34] sm:$0xf]
    %v140 = vld [vmem:[#allocation7 + $0x38] sm:$0xf]
    %v141 = vld [vmem:[#allocation7 + $0x3c] sm:$0xf]
    %v142 = vld [vmem:[%s4] sm:$0x1]
    %v143 = vpack.c.bf16 %v125, %v125
    %v145 = vperm.slane %v142, 0
    %v163 = vunpack.c.l.b16 %v126
    %v164 = vunpack.c.l.b16 %v127
    %v165 = vunpack.c.l.b16 %v128
    %v166 = vunpack.c.l.b16 %v129
    %v167 = vunpack.c.l.b16 %v130
    %v168 = vunpack.c.l.b16 %v131
    %v169 = vunpack.c.l.b16 %v132
    %v170 = vunpack.c.l.b16 %v133
    %v171 = vunpack.c.l.b16 %v134
    %v172 = vunpack.c.l.b16 %v135
    %v173 = vunpack.c.l.b16 %v136
    %v174 = vunpack.c.l.b16 %v137
    %v175 = vunpack.c.l.b16 %v138
    %v176 = vunpack.c.l.b16 %v139
    %v177 = vunpack.c.l.b16 %v140
    %v178 = vunpack.c.l.b16 %v141
    %v179 = vpack.c.b16 %v164, %v163
    %v180 = vpack.c.b16 %v166, %v165
    %v181 = vpack.c.b16 %v168, %v167
    %v182 = vpack.c.b16 %v170, %v169
    %v183 = vpack.c.b16 %v172, %v171
    %v184 = vpack.c.b16 %v174, %v173
    %v185 = vpack.c.b16 %v176, %v175
    %v186 = vpack.c.b16 %v178, %v177
    %195 = vmatpush.bf16.msra.mxu0 %v186
    %196 = vmatpush.bf16.msra.mxu0 %v185
    %197 = vmatpush.bf16.msra.mxu0 %v184
    %198 = vmatpush.bf16.msra.mxu0 %v183
    %199 = vmatpush.bf16.msra.mxu0 %v182
    %200 = vmatpush.bf16.msra.mxu0 %v181
    %201 = vmatpush.bf16.msra.mxu0 %v180
    %202 = vmatpush.bf16.msra.mxu0 %v179
    %203 = vmatmul.bf16.gmra.mxu0 %v143
    %v204 = vpop.f32.mrf.mxu0
    %v205 = vadd.f32 %v145, %v204
    %v206 = vpop.f32.mrf.mxu0
    %207 = vdwg.mxu0
    %v208 = vmax.f32 %v205, 0.0
    %v209 = vld [vmem:[#allocation8] sm:$0xf]
    %v210 = vld [vmem:[#allocation8 + $0x4] sm:$0xf]
    %v211 = vld [vmem:[#allocation8 + $0x8] sm:$0xf]
    %v212 = vld [vmem:[#allocation8 + $0xc] sm:$0xf]
    %v213 = vld [vmem:[#allocation8 + $0x10] sm:$0xf]
    %v214 = vld [vmem:[#allocation8 + $0x14] sm:$0xf]
    %v215 = vld [vmem:[#allocation8 + $0x18] sm:$0xf]
    %v216 = vld [vmem:[#allocation8 + $0x1c] sm:$0xf]
    %v217 = vld [vmem:[#allocation8 + $0x20] sm:$0xf]
    %v218 = vld [vmem:[#allocation8 + $0x24] sm:$0xf]
    %v219 = vld [vmem:[#allocation8 + $0x28] sm:$0xf]
    %v220 = vld [vmem:[#allocation8 + $0x2c] sm:$0xf]
    %v221 = vld [vmem:[#allocation8 + $0x30] sm:$0xf]
    %v222 = vld [vmem:[#allocation8 + $0x34] sm:$0xf]
    %v223 = vld [vmem:[#allocation8 + $0x38] sm:$0xf]
    %v224 = vld [vmem:[#allocation8 + $0x3c] sm:$0xf]
    %v225 = vpack.c.bf16 %v208, %v208
    %v242 = vunpack.c.l.b16 %v209
    %v243 = vunpack.c.l.b16 %v210
    %v244 = vunpack.c.l.b16 %v211
    %v245 = vunpack.c.l.b16 %v212
    %v246 = vunpack.c.l.b16 %v213
    %v247 = vunpack.c.l.b16 %v214
    %v248 = vunpack.c.l.b16 %v215
    %v249 = vunpack.c.l.b16 %v216
    %v250 = vunpack.c.l.b16 %v217
    %v251 = vunpack.c.l.b16 %v218
    %v252 = vunpack.c.l.b16 %v219
    %v253 = vunpack.c.l.b16 %v220
    %v254 = vunpack.c.l.b16 %v221
    %v255 = vunpack.c.l.b16 %v222
    %v256 = vunpack.c.l.b16 %v223
    %v257 = vunpack.c.l.b16 %v224
    %v258 = vpack.c.b16 %v243, %v242
    %v259 = vpack.c.b16 %v245, %v244
    %v260 = vpack.c.b16 %v247, %v246
    %v261 = vpack.c.b16 %v249, %v248
    %v262 = vpack.c.b16 %v251, %v250
    %v263 = vpack.c.b16 %v253, %v252
    %v264 = vpack.c.b16 %v255, %v254
    %v265 = vpack.c.b16 %v257, %v256
    %274 = vmatpush.bf16.msra.mxu0 %v265
    %275 = vmatpush.bf16.msra.mxu0 %v264
    %276 = vmatpush.bf16.msra.mxu0 %v263
    %277 = vmatpush.bf16.msra.mxu0 %v262
    %278 = vmatpush.bf16.msra.mxu0 %v261
    %279 = vmatpush.bf16.msra.mxu0 %v260
    %280 = vmatpush.bf16.msra.mxu0 %v259
    %281 = vmatpush.bf16.msra.mxu0 %v258
    %282 = vmatmul.bf16.gmra.mxu0 %v225
    %v283 = vpop.f32.mrf.mxu0
    %v284 = vadd.f32 0.0, %v283
    %v285 = vpop.f32.mrf.mxu0
    %286 = vdwg.mxu0
    %v287 = vmax.f32 %v284, 0.0
    %288 = vst [vmem:[#allocation10] sm:$0xff] %v287
    // Predicated region
    $region42: #{_forward_impl.1} parent=1 // pred_check
      _
    $region43: #{_forward_impl.1} parent=1 // pred_check_branch
      %290 = sbr.rel (0) target = $region45
    $region44: #{_forward_impl.1} parent=1 // pred_region
      %292 = vsyncadd [#allocation4], 0
      %s294 = sshll.u32 [#allocation10], 4
      %s295 = int_to_ptr.vmem [resolvable:$true] %s294
      %s296 = sshll.u32 %s6, 4
      %s297 = int_to_ptr.hbm [resolvable:$true] %s296
      %299 = dma.vmem_to_hbm [thread:$0]  %s295, 128, %s297, [#allocation4]
    $region45: #{_forward_impl.1} parent=1 // pred_fallthru
      _
    // Predicated region
    $region46: #{_forward_impl.1} parent=1 // pred_check
      _
    $region47: #{_forward_impl.1} parent=1 // pred_check_branch
      %301 = sbr.rel (0) target = $region49
    $region48: #{_forward_impl.1} parent=1 // pred_region
      %303 = dma.done [#allocation4], 128
    $region49: #{_forward_impl.1} parent=1 // pred_fallthru
      _
    %304 = vsyncpa [#allocation3], 1
    %305 = vsyncpa [#allocation6], 1
    %306 = vsyncpa [#allocation9], 1
    %307 = vsyncpa [#allocation4], 1

</llo_original>
